<compile_context>
chip_gen: v7x
topology: tpu7x:2x2x1
jax: 0.10.0
libtpu: 0.0.40
codegen_flags: <defaults>
</compile_context>

<pallas_src>
import functools

import jax
import jax.numpy as jnp
from jax.experimental import pallas as pl
from jax.experimental.pallas import tpu as pltpu


def _round_up(x, m):
    return ((x + m - 1) // m) * m


def _trueg_kernel(dec_hidden, x_dim,
                  zT_ref, w1_ref, w23_ref, w4_ref, b_ref, o_ref):
    """One batch tile of the whole 4-layer decoder, transposed layout.

    zT_ref : (z_dim, tb)                   bf16
    w1_ref : (dec_hidden, z_dim)           bf16  (PyTorch (out, in) layout)
    w23_ref: (2*dec_hidden, dec_hidden)    bf16  (w2 stacked over w3)
    w4_ref : (x_dim, dec_hidden)           bf16
    b_ref  : (max(dec_hidden, x_dim), 4)   f32   (b1|b2|b3|b4 in columns)
    o_ref  : (x_dim, tb)                   f32
    """
    dh = dec_hidden

    b1 = b_ref[pl.ds(0, dh), pl.ds(0, 1)]
    b2 = b_ref[pl.ds(0, dh), pl.ds(1, 1)]
    b3 = b_ref[pl.ds(0, dh), pl.ds(2, 1)]
    b4 = b_ref[pl.ds(0, x_dim), pl.ds(3, 1)]

    # Layer 1: (dh, z_dim) @ (z_dim, tb) -> (dh, tb); bf16 MXU inputs, f32 accumulate.
    h = jnp.dot(w1_ref[...], zT_ref[...], preferred_element_type=jnp.float32)
    h = jnp.maximum(h + b1, 0.0)

    # Layer 2
    h = jnp.dot(w23_ref[pl.ds(0, dh), :], h.astype(jnp.bfloat16),
                preferred_element_type=jnp.float32)
    h = jnp.maximum(h + b2, 0.0)

    # Layer 3
    h = jnp.dot(w23_ref[pl.ds(dh, dh), :], h.astype(jnp.bfloat16),
                preferred_element_type=jnp.float32)
    h = jnp.maximum(h + b3, 0.0)

    # Layer 4 (no activation)
    out = jnp.dot(w4_ref[...], h.astype(jnp.bfloat16),
                  preferred_element_type=jnp.float32)
    out = out + b4
    o_ref[...] = out.astype(o_ref.dtype)


@functools.partial(jax.jit, static_argnames=("batch_tile",))
def trueg_forward(z, params, batch_tile=None):
    """TrueG.forward. z: (B, z_dim) f32.

    params use PyTorch layout: w1 (dec_hidden, z_dim), w2/w3 (dec_hidden, dec_hidden),
    w4 (x_dim, dec_hidden); b1..b3 (dec_hidden,), b4 (x_dim,).
    """
    B, z_dim = z.shape
    w1, w2, w3, w4 = params["w1"], params["w2"], params["w3"], params["w4"]
    b1, b2, b3, b4 = params["b1"], params["b2"], params["b3"], params["b4"]
    dec_hidden = w1.shape[0]
    x_dim = w4.shape[0]
    assert dec_hidden % 8 == 0, "dec_hidden must be a multiple of 8 (sublane tiling)"

    # --- batch tile: lives on the lane axis, so it must be a multiple of 128 --------
    if batch_tile is None:
        tb = 512
        # prefer >=2 grid steps so the pipeline has something to overlap and the
        # batch axis can shard across TensorCores (megacore / v7x).
        while tb > 128 and _round_up(B, tb) // tb < 2:
            tb //= 2
    else:
        tb = int(batch_tile)
    assert tb > 0 and tb % 128 == 0, "batch_tile must be a positive multiple of 128"

    B_pad = _round_up(B, tb)
    grid = (B_pad // tb,)

    # --- wrapper-side layout plumbing (pad batch, transpose, pack, cast) ------------
    z_pad = jnp.pad(z, ((0, B_pad - B), (0, 0)))
    zT = z_pad.T.astype(jnp.bfloat16)                                   # (z_dim, B_pad)

    w1b = w1.astype(jnp.bfloat16)                                       # (dh, z_dim)
    w23b = jnp.concatenate([w2, w3], axis=0).astype(jnp.bfloat16)       # (2*dh, dh)
    w4b = w4.astype(jnp.bfloat16)                                       # (x_dim, dh)

    rows = max(dec_hidden, x_dim)
    bpack = jnp.zeros((rows, 4), jnp.float32)
    bpack = bpack.at[:dec_hidden, 0].set(b1.astype(jnp.float32))
    bpack = bpack.at[:dec_hidden, 1].set(b2.astype(jnp.float32))
    bpack = bpack.at[:dec_hidden, 2].set(b3.astype(jnp.float32))
    bpack = bpack.at[:x_dim, 3].set(b4.astype(jnp.float32))

    # --- explicit VMEM budget: double-buffered streams + single-buffered weights ----
    weight_bytes = 2 * (w1b.size + w23b.size + w4b.size) + 4 * bpack.size
    stream_bytes = 2 * (z_dim * tb * 2) + 2 * (x_dim * tb * 4)
    act_bytes = 4 * dec_hidden * tb * 4       # a few live f32/bf16 intermediates
    vmem_limit = int(min(48 * 2 ** 20,
                         max(32 * 2 ** 20,
                             2 * (weight_bytes + stream_bytes + act_bytes))))

    def _const(shape):
        # Constant-index blocks: fetched once; single-buffered (no point double-buffering).
        return pl.BlockSpec(shape, lambda i: (0, 0), pipeline_mode=pl.Buffered(1))

    kernel = functools.partial(_trueg_kernel, dec_hidden, x_dim)

    outT = pl.pallas_call(
        kernel,
        out_shape=jax.ShapeDtypeStruct((x_dim, B_pad), jnp.float32),
        grid_spec=pltpu.PrefetchScalarGridSpec(
            num_scalar_prefetch=0,
            grid=grid,
            in_specs=[
                pl.BlockSpec((z_dim, tb), lambda i: (0, i)),      # streamed z tile
                _const(w1b.shape),
                _const(w23b.shape),
                _const(w4b.shape),
                _const(bpack.shape),
            ],
            out_specs=pl.BlockSpec((x_dim, tb), lambda i: (0, i)),  # lane-dense output
        ),
        compiler_params=pltpu.CompilerParams(
            dimension_semantics=("parallel",),
            vmem_limit_bytes=vmem_limit),
    )(zT, w1b, w23b, w4b, bpack)

    return outT.T[:B].astype(z.dtype)                               # (B, x_dim)


def init_trueg_params(key, z_dim, dec_hidden, x_dim, dtype=jnp.float32):
    """nn.Linear-style U(-1/sqrt(fan_in), 1/sqrt(fan_in)) init, PyTorch (out, in) layout."""
    dims = [(dec_hidden, z_dim), (dec_hidden, dec_hidden),
            (dec_hidden, dec_hidden), (x_dim, dec_hidden)]
    params = {}
    for idx, (fan_out, fan_in) in enumerate(dims, start=1):
        key, kw, kb = jax.random.split(key, 3)
        bound = 1.0 / (float(fan_in) ** 0.5)
        params[f"w{idx}"] = jax.random.uniform(
            kw, (fan_out, fan_in), dtype, minval=-bound, maxval=bound)
        params[f"b{idx}"] = jax.random.uniform(
            kb, (fan_out,), dtype, minval=-bound, maxval=bound)
    return params


def trueg_reference(z, params):
    """Pure-JAX f32 reference matching the PyTorch module semantics."""
    h = jnp.maximum(z @ params["w1"].T + params["b1"], 0.0)
    h = jnp.maximum(h @ params["w2"].T + params["b2"], 0.0)
    h = jnp.maximum(h @ params["w3"].T + params["b3"], 0.0)
    return h @ params["w4"].T + params["b4"]


if __name__ == "__main__":
    # Small config consistent with TrueG(args): z_dim, dec_hidden, x_dim.
    # B=384 exercises batch padding (-> 512) and a multi-step grid (tb=256, grid=(2,)).
    B, Z_DIM, DEC_HIDDEN, X_DIM = 384, 16, 32, 8

    key = jax.random.PRNGKey(0)
    key, kz = jax.random.split(key)
    z = jax.random.normal(kz, (B, Z_DIM), dtype=jnp.float32)
    params = init_trueg_params(key, Z_DIM, DEC_HIDDEN, X_DIM)

    out = trueg_forward(z, params)
    out = jax.block_until_ready(out)

    ref = trueg_reference(z, params)
    assert out.shape == (B, X_DIM)
    # Kernel intentionally uses bf16 MXU inputs with f32 accumulation, so compare
    # against the f32 reference with a bf16-level tolerance.
    assert jnp.allclose(out, ref, atol=5e-2, rtol=5e-2), "Pallas output mismatch vs reference"

    print("KERNEL_OK")
</pallas_src>

<mosaic_0001>
module attributes {stable_mosaic.version = 11 : i64} {
  func.func @_trueg_kernel(%arg0: i32, %arg1: memref<16x256xbf16, #tpu.memory_space<vmem>>, %arg2: memref<32x16xbf16, #tpu.memory_space<vmem>>, %arg3: memref<64x32xbf16, #tpu.memory_space<vmem>>, %arg4: memref<8x32xbf16, #tpu.memory_space<vmem>>, %arg5: memref<32x4xf32, #tpu.memory_space<vmem>>, %arg6: memref<8x256xf32, #tpu.memory_space<vmem>>) attributes {dimension_semantics = [#tpu.dimension_semantics<parallel>], iteration_bounds = array<i64: 2>, scalar_prefetch = 0 : i64, scratch_operands = 0 : i64, tpu.core_type = #tpu.core_type<tc>, window_params = [{transform_indices = @transform_0, window_bounds = array<i64: 16, 256>}, {pipeline_mode = #tpu.pipeline_mode<synchronous>, transform_indices = @transform_1, window_bounds = array<i64: 32, 16>}, {pipeline_mode = #tpu.pipeline_mode<synchronous>, transform_indices = @transform_2, window_bounds = array<i64: 64, 32>}, {pipeline_mode = #tpu.pipeline_mode<synchronous>, transform_indices = @transform_3, window_bounds = array<i64: 8, 32>}, {pipeline_mode = #tpu.pipeline_mode<synchronous>, transform_indices = @transform_4, window_bounds = array<i64: 32, 4>}, {transform_indices = @transform_5, window_bounds = array<i64: 8, 256>}]} {
    %c0 = arith.constant 0 : index
    %c0_0 = arith.constant 0 : index
    %0 = vector.load %arg5[%c0, %c0_0] : memref<32x4xf32, #tpu.memory_space<vmem>>, vector<32x1xf32>
    %c0_1 = arith.constant 0 : index
    %c1 = arith.constant 1 : index
    %1 = vector.load %arg5[%c0_1, %c1] : memref<32x4xf32, #tpu.memory_space<vmem>>, vector<32x1xf32>
    %c0_2 = arith.constant 0 : index
    %c2 = arith.constant 2 : index
    %2 = vector.load %arg5[%c0_2, %c2] : memref<32x4xf32, #tpu.memory_space<vmem>>, vector<32x1xf32>
    %c0_3 = arith.constant 0 : index
    %c3 = arith.constant 3 : index
    %3 = vector.load %arg5[%c0_3, %c3] : memref<32x4xf32, #tpu.memory_space<vmem>>, vector<8x1xf32>
    %c0_4 = arith.constant 0 : index
    %c0_5 = arith.constant 0 : index
    %4 = vector.load %arg2[%c0_4, %c0_5] : memref<32x16xbf16, #tpu.memory_space<vmem>>, vector<32x16xbf16>
    %c0_6 = arith.constant 0 : index
    %c0_7 = arith.constant 0 : index
    %5 = vector.load %arg1[%c0_6, %c0_7] : memref<16x256xbf16, #tpu.memory_space<vmem>>, vector<16x256xbf16>
    %cst = arith.constant dense<0.000000e+00> : vector<32x256xf32>
    %6 = tpu.matmul %4, %5, %cst {dimension_numbers = #tpu.dot_dimension_numbers<[1], [0], [0], [1], [0, 0, 1, 1], [], []>} : vector<32x16xbf16>, vector<16x256xbf16>, vector<32x256xf32> -> vector<32x256xf32>
    %7 = vector.broadcast %0 : vector<32x1xf32> to vector<32x256xf32>
    %8 = arith.addf %6, %7 : vector<32x256xf32>
    %cst_8 = arith.constant 0.000000e+00 : f32
    %9 = vector.broadcast %cst_8 : f32 to vector<32x256xf32>
    %10 = arith.maximumf %8, %9 : vector<32x256xf32>
    %c0_9 = arith.constant 0 : index
    %c0_10 = arith.constant 0 : index
    %11 = vector.load %arg3[%c0_9, %c0_10] : memref<64x32xbf16, #tpu.memory_space<vmem>>, vector<32x32xbf16>
    %12 = arith.truncf %10 : vector<32x256xf32> to vector<32x256xbf16>
    %cst_11 = arith.constant dense<0.000000e+00> : vector<32x256xf32>
    %13 = tpu.matmul %11, %12, %cst_11 {dimension_numbers = #tpu.dot_dimension_numbers<[1], [0], [0], [1], [0, 0, 1, 1], [], []>} : vector<32x32xbf16>, vector<32x256xbf16>, vector<32x256xf32> -> vector<32x256xf32>
    %14 = vector.broadcast %1 : vector<32x1xf32> to vector<32x256xf32>
    %15 = arith.addf %13, %14 : vector<32x256xf32>
    %cst_12 = arith.constant 0.000000e+00 : f32
    %16 = vector.broadcast %cst_12 : f32 to vector<32x256xf32>
    %17 = arith.maximumf %15, %16 : vector<32x256xf32>
    %c32 = arith.constant 32 : index
    %c0_13 = arith.constant 0 : index
    %18 = vector.load %arg3[%c32, %c0_13] : memref<64x32xbf16, #tpu.memory_space<vmem>>, vector<32x32xbf16>
    %19 = arith.truncf %17 : vector<32x256xf32> to vector<32x256xbf16>
    %cst_14 = arith.constant dense<0.000000e+00> : vector<32x256xf32>
    %20 = tpu.matmul %18, %19, %cst_14 {dimension_numbers = #tpu.dot_dimension_numbers<[1], [0], [0], [1], [0, 0, 1, 1], [], []>} : vector<32x32xbf16>, vector<32x256xbf16>, vector<32x256xf32> -> vector<32x256xf32>
    %21 = vector.broadcast %2 : vector<32x1xf32> to vector<32x256xf32>
    %22 = arith.addf %20, %21 : vector<32x256xf32>
    %cst_15 = arith.constant 0.000000e+00 : f32
    %23 = vector.broadcast %cst_15 : f32 to vector<32x256xf32>
    %24 = arith.maximumf %22, %23 : vector<32x256xf32>
    %c0_16 = arith.constant 0 : index
    %c0_17 = arith.constant 0 : index
    %25 = vector.load %arg4[%c0_16, %c0_17] : memref<8x32xbf16, #tpu.memory_space<vmem>>, vector<8x32xbf16>
    %26 = arith.truncf %24 : vector<32x256xf32> to vector<32x256xbf16>
    %cst_18 = arith.constant dense<0.000000e+00> : vector<8x256xf32>
    %27 = tpu.matmul %25, %26, %cst_18 {dimension_numbers = #tpu.dot_dimension_numbers<[1], [0], [0], [1], [0, 0, 1, 1], [], []>} : vector<8x32xbf16>, vector<32x256xbf16>, vector<8x256xf32> -> vector<8x256xf32>
    %28 = vector.broadcast %3 : vector<8x1xf32> to vector<8x256xf32>
    %29 = arith.addf %27, %28 : vector<8x256xf32>
    %c0_19 = arith.constant 0 : index
    %c0_20 = arith.constant 0 : index
    %30 = vector.load %arg6[%c0_19, %c0_20] : memref<8x256xf32, #tpu.memory_space<vmem>>, vector<8x256xf32>
    tpu.vector_store %arg6[%c0_19, %c0_20], %29 {strides = array<i32>} : memref<8x256xf32, #tpu.memory_space<vmem>>, vector<8x256xf32>,
    return
  }
  func.func @transform_0(%arg0: i32) -> (i32, i32) {
    %c0_i32 = arith.constant 0 : i32
    %c0_i32_0 = arith.constant 0 : i32
    return %c0_i32, %arg0 : i32, i32
  }
  func.func @transform_1(%arg0: i32) -> (i32, i32) {
    %c0_i32 = arith.constant 0 : i32
    %c0_i32_0 = arith.constant 0 : i32
    %c0_i32_1 = arith.constant 0 : i32
    return %c0_i32, %c0_i32_0 : i32, i32
  }
  func.func @transform_2(%arg0: i32) -> (i32, i32) {
    %c0_i32 = arith.constant 0 : i32
    %c0_i32_0 = arith.constant 0 : i32
    %c0_i32_1 = arith.constant 0 : i32
    return %c0_i32, %c0_i32_0 : i32, i32
  }
  func.func @transform_3(%arg0: i32) -> (i32, i32) {
    %c0_i32 = arith.constant 0 : i32
    %c0_i32_0 = arith.constant 0 : i32
    %c0_i32_1 = arith.constant 0 : i32
    return %c0_i32, %c0_i32_0 : i32, i32
  }
  func.func @transform_4(%arg0: i32) -> (i32, i32) {
    %c0_i32 = arith.constant 0 : i32
    %c0_i32_0 = arith.constant 0 : i32
    %c0_i32_1 = arith.constant 0 : i32
    return %c0_i32, %c0_i32_0 : i32, i32
  }
  func.func @transform_5(%arg0: i32) -> (i32, i32) {
    %c0_i32 = arith.constant 0 : i32
    %c0_i32_0 = arith.constant 0 : i32
    return %c0_i32, %arg0 : i32, i32
  }
}

</mosaic_0001>

<llo_original>
// kernel: trueg_forward.1
$region0: #{trueg_forward.1}
  #allocation0 [shape = 'u32[]', space=smem, size = 0x4, offset = 0x4, fixed_abs, tag = 'smem constant byte address 0x4 - core index']
  #allocation1 [shape = 'u32[144,128]{1,0:T(1,128)}', space=vmem, size = 0x12000, scoped, tag = 'internal scratch']
  %s0 = inlined_call_operand.vmem [shape: bf16[16,512], index: 0, kind: input, shape index: {}]
  %s1 = inlined_call_operand.vmem [shape: bf16[32,16], index: 1, kind: input, shape index: {}]
  %s2 = inlined_call_operand.vmem [shape: bf16[64,32], index: 2, kind: input, shape index: {}]
  %s3 = inlined_call_operand.vmem [shape: bf16[8,32], index: 3, kind: input, shape index: {}]
  %s4 = inlined_call_operand.vmem [shape: f32[32,4], index: 4, kind: input, shape index: {}]
  %s5 = inlined_call_operand.vmem [shape: f32[8,512], index: 5, kind: output, shape index: {}]
  %s6 = sld [smem:[#allocation0]]
  $region91: #{trueg_forward.1} parent=0
    _
  %s8 = ssub.s32 1, %s6
  %s9 = scalar_select 0, %s8, %s6
  $region1: #{trueg_forward.1} parent=0
    #allocation2 [shape = 'u8[16384]{0}', space=vmem, size = 0x4000, scoped, tag = 'input window, operand 0']
    loop: start=0, step=1, limit=4
    $region2: #{trueg_forward.1} parent=1 // loop_pre_header
      _
    $region3: #{trueg_forward.1} parent=1 // loop_header
      %s11 = sphi 0, %s15
      %p12 = scmp.ge.s32.totalorder %s11, 4
      %s21 = sphi 0, %s23
      %s24 = sphi 0, %s21
      %s25 = sphi 0, %s24
      %s41 = sphi 0, %s25
      %s45 = sphi 0, %s45
      %s47 = sphi 0, %s45
      %s48 = sphi 0, %s47
      %s62 = sphi 0, %s48
      %s66 = sphi 0, %s66
      %s68 = sphi 0, %s66
      %s69 = sphi 0, %s68
      %s83 = sphi 0, %s69
      %s87 = sphi 0, %s87
      %s89 = sphi 0, %s87
      %s90 = sphi 0, %s89
      %s104 = sphi 0, %s90
      %s108 = sphi 0, %s108
      %s110 = sphi 0, %s108
      %s111 = sphi 0, %s110
      %s125 = sphi 0, %s111
      %s131 = sphi 0, %s133
      %s134 = sphi 0, %s131
      %s135 = sphi 0, %s134
      %s151 = sphi 0, %s135
    $region4: #{trueg_forward.1} parent=1 // loop_header_branch
      %14 = sbr.rel (%p12) target = $region8
    $region5: #{trueg_forward.1} parent=1 // loop_body
      %s16 = ssub.s32 %s11, 1
      %s17 = ssub.s32 %s11, 2
      %s18 = sadd.s32 %s11, 1
      %s19 = ssub.s32 %s11, %s18
      %p20 = scmp.eq.s32.totalorder %s19, 0
      %s22 = sadd.s32 %s21, 1
      %s23 = scalar_select %p20, %s21, %s22
      %p26 = pneg %p20
      %p27 = scmp.eq.s32.totalorder %s11, 1
      %p28 = por %p26, %p27
      %p29 = scmp.ne.s32.totalorder %s21, %s24
      %p30 = scmp.eq.s32.totalorder %s11, 0
      %p31 = por %p29, %p30
      %p32 = scmp.ne.s32.totalorder %s21, %s24
      %p33 = scmp.eq.s32.totalorder %s16, 1
      %p34 = por %p32, %p33
      %p35 = scmp.ne.s32.totalorder %s24, %s25
      %p36 = scmp.eq.s32.totalorder %s16, 0
      %p37 = por %p35, %p36
      %p38 = scmp.ne.s32.totalorder %s24, %s25
      %p39 = scmp.eq.s32.totalorder %s17, 1
      %p40 = por %p38, %p39
      %p42 = scmp.ne.s32.totalorder %s25, %s41
      %p43 = scmp.eq.s32.totalorder %s17, 0
      %p44 = por %p42, %p43
      %s46 = sadd.s32 %s45, 1
      %p49 = scmp.eq.s32.totalorder %s11, 1
      %p50 = scmp.ne.s32.totalorder %s45, %s47
      %p51 = scmp.eq.s32.totalorder %s11, 0
      %p52 = por %p50, %p51
      %p53 = scmp.ne.s32.totalorder %s45, %s47
      %p54 = scmp.eq.s32.totalorder %s16, 1
      %p55 = por %p53, %p54
      %p56 = scmp.ne.s32.totalorder %s47, %s48
      %p57 = scmp.eq.s32.totalorder %s16, 0
      %p58 = por %p56, %p57
      %p59 = scmp.ne.s32.totalorder %s47, %s48
      %p60 = scmp.eq.s32.totalorder %s17, 1
      %p61 = por %p59, %p60
      %p63 = scmp.ne.s32.totalorder %s48, %s62
      %p64 = scmp.eq.s32.totalorder %s17, 0
      %p65 = por %p63, %p64
      %s67 = sadd.s32 %s66, 1
      %p70 = scmp.eq.s32.totalorder %s11, 1
      %p71 = scmp.ne.s32.totalorder %s66, %s68
      %p72 = scmp.eq.s32.totalorder %s11, 0
      %p73 = por %p71, %p72
      %p74 = scmp.ne.s32.totalorder %s66, %s68
      %p75 = scmp.eq.s32.totalorder %s16, 1
      %p76 = por %p74, %p75
      %p77 = scmp.ne.s32.totalorder %s68, %s69
      %p78 = scmp.eq.s32.totalorder %s16, 0
      %p79 = por %p77, %p78
      %p80 = scmp.ne.s32.totalorder %s68, %s69
      %p81 = scmp.eq.s32.totalorder %s17, 1
      %p82 = por %p80, %p81
      %p84 = scmp.ne.s32.totalorder %s69, %s83
      %p85 = scmp.eq.s32.totalorder %s17, 0
      %p86 = por %p84, %p85
      %s88 = sadd.s32 %s87, 1
      %p91 = scmp.eq.s32.totalorder %s11, 1
      %p92 = scmp.ne.s32.totalorder %s87, %s89
      %p93 = scmp.eq.s32.totalorder %s11, 0
      %p94 = por %p92, %p93
      %p95 = scmp.ne.s32.totalorder %s87, %s89
      %p96 = scmp.eq.s32.totalorder %s16, 1
      %p97 = por %p95, %p96
      %p98 = scmp.ne.s32.totalorder %s89, %s90
      %p99 = scmp.eq.s32.totalorder %s16, 0
      %p100 = por %p98, %p99
      %p101 = scmp.ne.s32.totalorder %s89, %s90
      %p102 = scmp.eq.s32.totalorder %s17, 1
      %p103 = por %p101, %p102
      %p105 = scmp.ne.s32.totalorder %s90, %s104
      %p106 = scmp.eq.s32.totalorder %s17, 0
      %p107 = por %p105, %p106
      %s109 = sadd.s32 %s108, 1
      %p112 = scmp.eq.s32.totalorder %s11, 1
      %p113 = scmp.ne.s32.totalorder %s108, %s110
      %p114 = scmp.eq.s32.totalorder %s11, 0
      %p115 = por %p113, %p114
      %p116 = scmp.ne.s32.totalorder %s108, %s110
      %p117 = scmp.eq.s32.totalorder %s16, 1
      %p118 = por %p116, %p117
      %p119 = scmp.ne.s32.totalorder %s110, %s111
      %p120 = scmp.eq.s32.totalorder %s16, 0
      %p121 = por %p119, %p120
      %p122 = scmp.ne.s32.totalorder %s110, %s111
      %p123 = scmp.eq.s32.totalorder %s17, 1
      %p124 = por %p122, %p123
      %p126 = scmp.ne.s32.totalorder %s111, %s125
      %p127 = scmp.eq.s32.totalorder %s17, 0
      %p128 = por %p126, %p127
      %s129 = ssub.s32 %s11, %s18
      %p130 = scmp.eq.s32.totalorder %s129, 0
      %s132 = sadd.s32 %s131, 1
      %s133 = scalar_select %p130, %s131, %s132
      %p136 = pneg %p130
      %p137 = scmp.eq.s32.totalorder %s11, 1
      %p138 = por %p136, %p137
      %p139 = scmp.ne.s32.totalorder %s131, %s134
      %p140 = scmp.eq.s32.totalorder %s11, 0
      %p141 = por %p139, %p140
      %p142 = scmp.ne.s32.totalorder %s131, %s134
      %p143 = scmp.eq.s32.totalorder %s16, 1
      %p144 = por %p142, %p143
      %p145 = scmp.ne.s32.totalorder %s134, %s135
      %p146 = scmp.eq.s32.totalorder %s16, 0
      %p147 = por %p145, %p146
      %p148 = scmp.ne.s32.totalorder %s134, %s135
      %p149 = scmp.eq.s32.totalorder %s17, 1
      %p150 = por %p148, %p149
      %p152 = scmp.ne.s32.totalorder %s135, %s151
      %p153 = scmp.eq.s32.totalorder %s17, 0
      %p154 = por %p152, %p153
      %p155 = scmp.le.s32.totalorder 1, %s11
      %p156 = scmp.lt.s32.totalorder %s11, 3
      %p157 = pnand %p155, %p156
      %p158 = pneg %p157
      // Predicated region
      $region9: #{trueg_forward.1} parent=5 // pred_check
        _
      $region10: #{trueg_forward.1} parent=5 // pred_check_branch
        %160 = sbr.rel (%p157) target = $region12
      $region11: #{trueg_forward.1} parent=5 // pred_region
        %s161 = ssub.s32 %s11, 1
        // Predicated region
        $region13: #{trueg_forward.1} parent=11 // pred_check
          %p162 = pneg %p58
        $region14: #{trueg_forward.1} parent=11 // pred_check_branch
          %164 = sbr.rel (%p162) target = $region16
        $region15: #{trueg_forward.1} parent=11 // pred_region
          _
        $region16: #{trueg_forward.1} parent=11 // pred_fallthru
          _
        // Predicated region
        $region17: #{trueg_forward.1} parent=11 // pred_check
          %p165 = pneg %p79
        $region18: #{trueg_forward.1} parent=11 // pred_check_branch
          %167 = sbr.rel (%p165) target = $region20
        $region19: #{trueg_forward.1} parent=11 // pred_region
          _
        $region20: #{trueg_forward.1} parent=11 // pred_fallthru
          _
        // Predicated region
        $region21: #{trueg_forward.1} parent=11 // pred_check
          %p168 = pneg %p100
        $region22: #{trueg_forward.1} parent=11 // pred_check_branch
          %170 = sbr.rel (%p168) target = $region24
        $region23: #{trueg_forward.1} parent=11 // pred_region
          _
        $region24: #{trueg_forward.1} parent=11 // pred_fallthru
          _
        // Predicated region
        $region25: #{trueg_forward.1} parent=11 // pred_check
          %p171 = pneg %p121
        $region26: #{trueg_forward.1} parent=11 // pred_check_branch
          %173 = sbr.rel (%p171) target = $region28
        $region27: #{trueg_forward.1} parent=11 // pred_region
          _
        $region28: #{trueg_forward.1} parent=11 // pred_fallthru
          _
      $region12: #{trueg_forward.1} parent=5 // pred_fallthru
        _
      %p174 = scmp.lt.s32.totalorder %s11, 2
      // Predicated region
      $region29: #{trueg_forward.1} parent=5 // pred_check
        %p175 = pneg %p174
      $region30: #{trueg_forward.1} parent=5 // pred_check_branch
        %177 = sbr.rel (%p175) target = $region32
      $region31: #{trueg_forward.1} parent=5 // pred_region
        // Predicated region
        $region33: #{trueg_forward.1} parent=31 // pred_check
          %p178 = pneg %p31
        $region34: #{trueg_forward.1} parent=31 // pred_check_branch
          %180 = sbr.rel (%p178) target = $region36
        $region35: #{trueg_forward.1} parent=31 // pred_region
          %s181 = sand.u32 %s21, 1
          %s182 = sand.u32 %s21, 1
          %s183 = smul.addr %s182, 16
          %s184 = scalar_lea.vmem [#allocation2], %s183
          %s185 = smul.u32 2, %s11
          %s186 = smul.addr %s185, 4
          %s187 = scalar_lea.vmem %s0, %s186
          // Predicated region
          $region37: #{trueg_forward.1} parent=35 // pred_check
            _
          $region38: #{trueg_forward.1} parent=35 // pred_check_branch
            %189 = sbr.rel (0) target = $region40
          $region39: #{trueg_forward.1} parent=35 // pred_region
            // Predicated region
            $region41: #{trueg_forward.1} parent=39 // pred_check
              _
            $region42: #{trueg_forward.1} parent=39 // pred_check_branch
              %191 = sbr.rel (0) target = $region44
            $region43: #{trueg_forward.1} parent=39 // pred_region
              // Predicated region
              $region56: #{trueg_forward.1} parent=43 // pred_check
                _
              $region57: #{trueg_forward.1} parent=43 // pred_check_branch
                %208 = sbr.rel (0) target = $region59
              $region58: #{trueg_forward.1} parent=43 // pred_region
                loop: start=0, step=1, limit=1
                $region60: #{trueg_forward.1} parent=58 // loop_pre_header
                  _
                $region61: #{trueg_forward.1} parent=58 // loop_header
                  %s210 = sphi 0, %s214
                  %p211 = scmp.ge.s32.totalorder %s210, 1
                  %s215 = sphi %s187, %s187
                  %s216 = sphi %s184, %s184
                $region62: #{trueg_forward.1} parent=58 // loop_header_branch
                  %213 = sbr.rel (%p211) target = $region66
                $region63: #{trueg_forward.1} parent=58 // loop_body
                  %v217 = vld [vmem:[%s215] sm:$0xff]
                  %218 = vst [vmem:[%s216] sm:$0xff] %v217
                  %v219 = vld [vmem:[%s215 + $0x10] sm:$0xff]
                  %220 = vst [vmem:[%s216 + $0x8] sm:$0xff] %v219
                $region64: #{trueg_forward.1} parent=58 // loop_footer
                  %s214 = sadd.s32 1, %s210
                $region65: #{trueg_forward.1} parent=58 // loop_footer_branch
                  %209 = sbr.rel target = $region61
                $region66: #{trueg_forward.1} parent=58 // loop_exit
                  _
              $region59: #{trueg_forward.1} parent=43 // pred_fallthru
                _
              // Predicated region
              $region67: #{trueg_forward.1} parent=43 // pred_check
                _
              $region68: #{trueg_forward.1} parent=43 // pred_check_branch
                %222 = sbr.rel target = $region70
              $region69: #{trueg_forward.1} parent=43 // pred_region
                _
              $region70: #{trueg_forward.1} parent=43 // pred_fallthru
                _
            $region44: #{trueg_forward.1} parent=39 // pred_fallthru
              _
            // Predicated region
            $region45: #{trueg_forward.1} parent=39 // pred_check
              _
            $region46: #{trueg_forward.1} parent=39 // pred_check_branch
              %193 = sbr.rel target = $region48
            $region47: #{trueg_forward.1} parent=39 // pred_region
              loop: start=0, step=1, limit=1
              $region49: #{trueg_forward.1} parent=47 // loop_pre_header
                _
              $region50: #{trueg_forward.1} parent=47 // loop_header
                %s196 = sphi 0, %s200
                %p197 = scmp.ge.s32.totalorder %s196, 1
                %s201 = sphi %s187, %s187
                %s202 = sphi %s184, %s184
              $region51: #{trueg_forward.1} parent=47 // loop_header_branch
                %199 = sbr.rel (%p197) target = $region55
              $region52: #{trueg_forward.1} parent=47 // loop_body
                %v203 = vld [vmem:[%s201] sm:$0xff]
                %204 = vst [vmem:[%s202] sm:$0xff] %v203
                %v205 = vld [vmem:[%s201 + $0x10] sm:$0xff]
                %206 = vst [vmem:[%s202 + $0x8] sm:$0xff] %v205
              $region53: #{trueg_forward.1} parent=47 // loop_footer
                %s200 = sadd.s32 1, %s196
              $region54: #{trueg_forward.1} parent=47 // loop_footer_branch
                %195 = sbr.rel target = $region50
              $region55: #{trueg_forward.1} parent=47 // loop_exit
                _
            $region48: #{trueg_forward.1} parent=39 // pred_fallthru
              _
          $region40: #{trueg_forward.1} parent=35 // pred_fallthru
            _
          %223 = vnop
        $region36: #{trueg_forward.1} parent=31 // pred_fallthru
          _
      $region32: #{trueg_forward.1} parent=5 // pred_fallthru
        _
      %p224 = scmp.le.s32.totalorder 1, %s11
      %p225 = scmp.lt.s32.totalorder %s11, 3
      %p226 = pnand %p224, %p225
      %p227 = pneg %p226
      // Predicated region
      $region71: #{trueg_forward.1} parent=5 // pred_check
        _
      $region72: #{trueg_forward.1} parent=5 // pred_check_branch
        %229 = sbr.rel (%p226) target = $region74
      $region73: #{trueg_forward.1} parent=5 // pred_region
        %s230 = ssub.s32 %s11, 1
        %s231 = sand.u32 %s24, 1
        %s232 = sand.u32 %s24, 1
        %s233 = smul.addr %s232, 16
        %s234 = scalar_lea.vmem [#allocation2], %s233
        // Predicated region
        $region75: #{trueg_forward.1} parent=73 // pred_check
          %p235 = pneg %p37
        $region76: #{trueg_forward.1} parent=73 // pred_check_branch
          %237 = sbr.rel (%p235) target = $region78
        $region77: #{trueg_forward.1} parent=73 // pred_region
          _
        $region78: #{trueg_forward.1} parent=73 // pred_fallthru
          _
        %s238 = sand.u32 %s24, 1
        %s239 = sand.u32 %s24, 1
        %s240 = smul.addr %s239, 16
        %s241 = scalar_lea.vmem [#allocation2], %s240
        %p242 = pneg %p37
        %p243 = pneg %p34
        %p244 = pneg %p58
        %p245 = pneg %p55
        %p246 = pneg %p79
        %p247 = pneg %p76
        %p248 = pneg %p100
        %p249 = pneg %p97
        %p250 = pneg %p121
        %p251 = pneg %p118
        %p252 = pneg %p147
        %p253 = pneg %p144
        %s254 = smul.u32 2, %s16
        %p255 = scmp.lt.s32.totalorder %s254, 3
        %s256 = scalar_select %p255, %s254, 3
        %s257 = smul.addr %s256, 8
        %s258 = scalar_lea.vmem %s5, %s257
        %s259 = smul.u32 2, %s16
        %s260 = smul.u32 2, %s16
        %p261 = scmp.lt.s32.totalorder %s260, 3
        %s262 = scalar_select %p261, %s260, 3
        %s263 = smul.addr %s262, 8
        %s264 = scalar_lea.vmem %s5, %s263
        %s265 = smul.u32 2, %s16
        %v267 = vld [vmem:[%s4] sm:$0xff]
        %v268 = vld [vmem:[%s4 + $0x8] sm:$0xff]
        %v269 = vld [vmem:[%s4 + $0x10] sm:$0xff]
        %v270 = vld [vmem:[%s4 + $0x18] sm:$0xff]
        %v271 = vld [vmem:[%s1] sm:$0xf]
        %v272 = vld [vmem:[%s1 + $0x4] sm:$0xf]
        %v273 = vld [vmem:[%s1 + $0x8] sm:$0xf]
        %v274 = vld [vmem:[%s1 + $0xc] sm:$0xf]
        %v275 = vld [vmem:[%s234] sm:$0xff]
        %v276 = vld [vmem:[%s234 + $0x8] sm:$0xff]
        %278 = vset.pattern.permute.xlu0 0
        %279 = vperm.xlu0 %278, %v267
        %v280 = vpop.permute.xlu0 %279
        %283 = vset.pattern.permute.xlu0 0
        %284 = vperm.xlu0 %283, %v268
        %v285 = vpop.permute.xlu0 %284
        %288 = vset.pattern.permute.xlu0 0
        %289 = vperm.xlu0 %288, %v269
        %v290 = vpop.permute.xlu0 %289
        %293 = vset.pattern.permute.xlu0 0
        %294 = vperm.xlu0 %293, %v270
        %v295 = vpop.permute.xlu0 %294
        %v301 = vunpack.c.l.b16 %v271
        %v302 = vunpack.c.l.b16 %v272
        %v303 = vunpack.c.l.b16 %v273
        %v304 = vunpack.c.l.b16 %v274
        %v305 = vpack.c.b16 %v302, %v301
        %v306 = vpack.c.b16 %v304, %v303
        %v309 = vunpack.c.l.b16 %v275
        %v310 = vunpack.c.h.b16 %v275
        %v311 = vunpack.c.l.b16 %v276
        %v312 = vunpack.c.h.b16 %v276
        %v313 = vpack.c.b16 %v311, %v309
        %v314 = vpack.c.b16 %v312, %v310
        %vm317 = vcmask 130048
        %v319 = vsel %vm317, %v305, 0
        %v322 = vsel %vm317, %v306, 0
        %324 = vmatprep.subr.bf16.mxu0 %v314
        %325 = vmatpush1.bf16.msra.mxu0 %v313
        %326 = vmatprep.subr.bf16.mxu0 0
        %327 = vmatpush1.bf16.msra.mxu0 0
        %328 = vmatprep.subr.bf16.mxu0 0
        %329 = vmatpush1.bf16.msra.mxu0 0
        %330 = vmatprep.subr.bf16.mxu0 0
        %331 = vmatpush1.bf16.msra.mxu0 0
        %332 = vmatprep.subr.bf16.mxu0 0
        %333 = vmatpush1.bf16.msra.mxu0 0
        %334 = vmatprep.subr.bf16.mxu0 0
        %335 = vmatpush1.bf16.msra.mxu0 0
        %336 = vmatprep.subr.bf16.mxu0 0
        %337 = vmatpush1.bf16.msra.mxu0 0
        %338 = vmatprep.subr.bf16.mxu0 0
        %339 = vmatpush1.bf16.msra.mxu0 0
        %340 = vmatprep.subr.bf16.mxu0 0
        %341 = vmatpush1.bf16.msra.mxu0 0
        %342 = vmatprep.subr.bf16.mxu0 0
        %343 = vmatpush1.bf16.msra.mxu0 0
        %344 = vmatprep.subr.bf16.mxu0 0
        %345 = vmatpush1.bf16.msra.mxu0 0
        %346 = vmatprep.subr.bf16.mxu0 0
        %347 = vmatpush1.bf16.msra.mxu0 0
        %348 = vmatprep.subr.bf16.mxu0 0
        %349 = vmatpush1.bf16.msra.mxu0 0
        %350 = vmatprep.subr.bf16.mxu0 0
        %351 = vmatpush1.bf16.msra.mxu0 0
        %352 = vmatprep.subr.bf16.mxu0 0
        %353 = vmatpush1.bf16.msra.mxu0 0
        %354 = vmatprep.subr.bf16.mxu0 0
        %355 = vmatpush1.bf16.msra.mxu0 0
        %356 = vmatprep.mubr.bf16.mxu0 0
        %357 = vmatmul.mubr.bf16.gmra.mrb[0].mxu0 %v319
        %v358 = vpop.f32.mrb[0].mxu0
        %v359 = vadd.f32 %v280, %v358
        %v360 = vpop.f32.mrb[0].mxu0
        %v361 = vadd.f32 %v280, %v360
        %v362 = vpop.f32.mrb[0].mxu0
        %v363 = vadd.f32 %v285, %v362
        %v364 = vpop.f32.mrb[0].mxu0
        %v365 = vadd.f32 %v285, %v364
        %366 = vmatprep.mubr.bf16.mxu0 0
        %367 = vmatmul.mubr.bf16.gmra.mrb[0].mxu0 %v322
        %v368 = vpop.f32.mrb[0].mxu0
        %v369 = vadd.f32 %v290, %v368
        %v370 = vpop.f32.mrb[0].mxu0
        %v371 = vadd.f32 %v290, %v370
        %v372 = vpop.f32.mrb[0].mxu0
        %v373 = vadd.f32 %v295, %v372
        %v374 = vpop.f32.mrb[0].mxu0
        %v375 = vadd.f32 %v295, %v374
        %376 = vdwg.mxu0
        %v377 = vmax.f32 %v359, 0.0
        %v378 = vmax.f32 %v361, 0.0
        %v379 = vmax.f32 %v363, 0.0
        %v380 = vmax.f32 %v365, 0.0
        %v381 = vmax.f32 %v369, 0.0
        %v382 = vmax.f32 %v371, 0.0
        %v383 = vmax.f32 %v373, 0.0
        %v384 = vmax.f32 %v375, 0.0
        %v385 = vld [vmem:[%s2] sm:$0xf]
        %v386 = vld [vmem:[%s2 + $0x4] sm:$0xf]
        %v387 = vld [vmem:[%s2 + $0x8] sm:$0xf]
        %v388 = vld [vmem:[%s2 + $0xc] sm:$0xf]
        %v389 = vpack.c.bf16 %v379, %v377
        %v390 = vpack.c.bf16 %v380, %v378
        %v391 = vpack.c.bf16 %v383, %v381
        %v392 = vpack.c.bf16 %v384, %v382
        %393 = vset.pattern.permute.xlu0 1
        %394 = vperm.xlu0 %393, %v267
        %v395 = vpop.permute.xlu0 %394
        %397 = vset.pattern.permute.xlu0 1
        %398 = vperm.xlu0 %397, %v268
        %v399 = vpop.permute.xlu0 %398
        %401 = vset.pattern.permute.xlu0 1
        %402 = vperm.xlu0 %401, %v269
        %v403 = vpop.permute.xlu0 %402
        %405 = vset.pattern.permute.xlu0 1
        %406 = vperm.xlu0 %405, %v270
        %v407 = vpop.permute.xlu0 %406
        %v413 = vunpack.c.l.b16 %v385
        %v414 = vunpack.c.l.b16 %v386
        %v415 = vunpack.c.l.b16 %v387
        %v416 = vunpack.c.l.b16 %v388
        %v417 = vpack.c.b16 %v414, %v413
        %v418 = vpack.c.b16 %v416, %v415
        %vm419 = vcmask 261120
        %v421 = vsel %vm419, %v417, 0
        %v424 = vsel %vm419, %v418, 0
        %426 = vmatprep.subr.bf16.mxu0 %v390
        %427 = vmatpush1.bf16.msra.mxu0 %v389
        %428 = vmatprep.subr.bf16.mxu0 %v392
        %429 = vmatpush1.bf16.msra.mxu0 %v391
        %430 = vmatprep.subr.bf16.mxu0 0
        %431 = vmatpush1.bf16.msra.mxu0 0
        %432 = vmatprep.subr.bf16.mxu0 0
        %433 = vmatpush1.bf16.msra.mxu0 0
        %434 = vmatprep.subr.bf16.mxu0 0
        %435 = vmatpush1.bf16.msra.mxu0 0
        %436 = vmatprep.subr.bf16.mxu0 0
        %437 = vmatpush1.bf16.msra.mxu0 0
        %438 = vmatprep.subr.bf16.mxu0 0
        %439 = vmatpush1.bf16.msra.mxu0 0
        %440 = vmatprep.subr.bf16.mxu0 0
        %441 = vmatpush1.bf16.msra.mxu0 0
        %442 = vmatprep.subr.bf16.mxu0 0
        %443 = vmatpush1.bf16.msra.mxu0 0
        %444 = vmatprep.subr.bf16.mxu0 0
        %445 = vmatpush1.bf16.msra.mxu0 0
        %446 = vmatprep.subr.bf16.mxu0 0
        %447 = vmatpush1.bf16.msra.mxu0 0
        %448 = vmatprep.subr.bf16.mxu0 0
        %449 = vmatpush1.bf16.msra.mxu0 0
        %450 = vmatprep.subr.bf16.mxu0 0
        %451 = vmatpush1.bf16.msra.mxu0 0
        %452 = vmatprep.subr.bf16.mxu0 0
        %453 = vmatpush1.bf16.msra.mxu0 0
        %454 = vmatprep.subr.bf16.mxu0 0
        %455 = vmatpush1.bf16.msra.mxu0 0
        %456 = vmatprep.subr.bf16.mxu0 0
        %457 = vmatpush1.bf16.msra.mxu0 0
        %458 = vmatprep.mubr.bf16.mxu0 0
        %459 = vmatmul.mubr.bf16.gmra.mrb[0].mxu0 %v421
        %v460 = vpop.f32.mrb[0].mxu0
        %v461 = vadd.f32 %v395, %v460
        %v462 = vpop.f32.mrb[0].mxu0
        %v463 = vadd.f32 %v395, %v462
        %v464 = vpop.f32.mrb[0].mxu0
        %v465 = vadd.f32 %v399, %v464
        %v466 = vpop.f32.mrb[0].mxu0
        %v467 = vadd.f32 %v399, %v466
        %468 = vmatprep.mubr.bf16.mxu0 0
        %469 = vmatmul.mubr.bf16.gmra.mrb[0].mxu0 %v424
        %v470 = vpop.f32.mrb[0].mxu0
        %v471 = vadd.f32 %v403, %v470
        %v472 = vpop.f32.mrb[0].mxu0
        %v473 = vadd.f32 %v403, %v472
        %v474 = vpop.f32.mrb[0].mxu0
        %v475 = vadd.f32 %v407, %v474
        %v476 = vpop.f32.mrb[0].mxu0
        %v477 = vadd.f32 %v407, %v476
        %478 = vdwg.mxu0
        %v479 = vmax.f32 %v461, 0.0
        %v480 = vmax.f32 %v463, 0.0
        %v481 = vmax.f32 %v465, 0.0
        %v482 = vmax.f32 %v467, 0.0
        %v483 = vmax.f32 %v471, 0.0
        %v484 = vmax.f32 %v473, 0.0
        %v485 = vmax.f32 %v475, 0.0
        %v486 = vmax.f32 %v477, 0.0
        %v487 = vld [vmem:[%s2 + $0x10] sm:$0xf]
        %v488 = vld [vmem:[%s2 + $0x14] sm:$0xf]
        %v489 = vld [vmem:[%s2 + $0x18] sm:$0xf]
        %v490 = vld [vmem:[%s2 + $0x1c] sm:$0xf]
        %v491 = vpack.c.bf16 %v481, %v479
        %v492 = vpack.c.bf16 %v482, %v480
        %v493 = vpack.c.bf16 %v485, %v483
        %v494 = vpack.c.bf16 %v486, %v484
        %495 = vset.pattern.permute.xlu0 2
        %496 = vperm.xlu0 %495, %v267
        %v497 = vpop.permute.xlu0 %496
        %499 = vset.pattern.permute.xlu0 2
        %500 = vperm.xlu0 %499, %v268
        %v501 = vpop.permute.xlu0 %500
        %503 = vset.pattern.permute.xlu0 2
        %504 = vperm.xlu0 %503, %v269
        %v505 = vpop.permute.xlu0 %504
        %507 = vset.pattern.permute.xlu0 2
        %508 = vperm.xlu0 %507, %v270
        %v509 = vpop.permute.xlu0 %508
        %v515 = vunpack.c.l.b16 %v487
        %v516 = vunpack.c.l.b16 %v488
        %v517 = vunpack.c.l.b16 %v489
        %v518 = vunpack.c.l.b16 %v490
        %v519 = vpack.c.b16 %v516, %v515
        %v520 = vpack.c.b16 %v518, %v517
        %v522 = vsel %vm419, %v519, 0
        %v525 = vsel %vm419, %v520, 0
        %527 = vmatprep.subr.bf16.mxu0 %v492
        %528 = vmatpush1.bf16.msra.mxu0 %v491
        %529 = vmatprep.subr.bf16.mxu0 %v494
        %530 = vmatpush1.bf16.msra.mxu0 %v493
        %531 = vmatprep.subr.bf16.mxu0 0
        %532 = vmatpush1.bf16.msra.mxu0 0
        %533 = vmatprep.subr.bf16.mxu0 0
        %534 = vmatpush1.bf16.msra.mxu0 0
        %535 = vmatprep.subr.bf16.mxu0 0
        %536 = vmatpush1.bf16.msra.mxu0 0
        %537 = vmatprep.subr.bf16.mxu0 0
        %538 = vmatpush1.bf16.msra.mxu0 0
        %539 = vmatprep.subr.bf16.mxu0 0
        %540 = vmatpush1.bf16.msra.mxu0 0
        %541 = vmatprep.subr.bf16.mxu0 0
        %542 = vmatpush1.bf16.msra.mxu0 0
        %543 = vmatprep.subr.bf16.mxu0 0
        %544 = vmatpush1.bf16.msra.mxu0 0
        %545 = vmatprep.subr.bf16.mxu0 0
        %546 = vmatpush1.bf16.msra.mxu0 0
        %547 = vmatprep.subr.bf16.mxu0 0
        %548 = vmatpush1.bf16.msra.mxu0 0
        %549 = vmatprep.subr.bf16.mxu0 0
        %550 = vmatpush1.bf16.msra.mxu0 0
        %551 = vmatprep.subr.bf16.mxu0 0
        %552 = vmatpush1.bf16.msra.mxu0 0
        %553 = vmatprep.subr.bf16.mxu0 0
        %554 = vmatpush1.bf16.msra.mxu0 0
        %555 = vmatprep.subr.bf16.mxu0 0
        %556 = vmatpush1.bf16.msra.mxu0 0
        %557 = vmatprep.subr.bf16.mxu0 0
        %558 = vmatpush1.bf16.msra.mxu0 0
        %559 = vmatprep.mubr.bf16.mxu0 0
        %560 = vmatmul.mubr.bf16.gmra.mrb[0].mxu0 %v522
        %v561 = vpop.f32.mrb[0].mxu0
        %v562 = vadd.f32 %v497, %v561
        %v563 = vpop.f32.mrb[0].mxu0
        %v564 = vadd.f32 %v497, %v563
        %v565 = vpop.f32.mrb[0].mxu0
        %v566 = vadd.f32 %v501, %v565
        %v567 = vpop.f32.mrb[0].mxu0
        %v568 = vadd.f32 %v501, %v567
        %569 = vmatprep.mubr.bf16.mxu0 0
        %570 = vmatmul.mubr.bf16.gmra.mrb[0].mxu0 %v525
        %v571 = vpop.f32.mrb[0].mxu0
        %v572 = vadd.f32 %v505, %v571
        %v573 = vpop.f32.mrb[0].mxu0
        %v574 = vadd.f32 %v505, %v573
        %v575 = vpop.f32.mrb[0].mxu0
        %v576 = vadd.f32 %v509, %v575
        %v577 = vpop.f32.mrb[0].mxu0
        %v578 = vadd.f32 %v509, %v577
        %579 = vdwg.mxu0
        %v580 = vmax.f32 %v562, 0.0
        %v581 = vmax.f32 %v564, 0.0
        %v582 = vmax.f32 %v566, 0.0
        %v583 = vmax.f32 %v568, 0.0
        %v584 = vmax.f32 %v572, 0.0
        %v585 = vmax.f32 %v574, 0.0
        %v586 = vmax.f32 %v576, 0.0
        %v587 = vmax.f32 %v578, 0.0
        %v588 = vld [vmem:[%s3] sm:$0xf]
        %v589 = vpack.c.bf16 %v582, %v580
        %v590 = vpack.c.bf16 %v583, %v581
        %v591 = vpack.c.bf16 %v586, %v584
        %v592 = vpack.c.bf16 %v587, %v585
        %593 = vset.pattern.permute.xlu0 3
        %594 = vperm.xlu0 %593, %v267
        %v595 = vpop.permute.xlu0 %594
        %v598 = vsel %vm419, %v588, 0
        %600 = vmatprep.subr.bf16.mxu0 %v590
        %601 = vmatpush1.bf16.msra.mxu0 %v589
        %602 = vmatprep.subr.bf16.mxu0 %v592
        %603 = vmatpush1.bf16.msra.mxu0 %v591
        %604 = vmatprep.subr.bf16.mxu0 0
        %605 = vmatpush1.bf16.msra.mxu0 0
        %606 = vmatprep.subr.bf16.mxu0 0
        %607 = vmatpush1.bf16.msra.mxu0 0
        %608 = vmatprep.subr.bf16.mxu0 0
        %609 = vmatpush1.bf16.msra.mxu0 0
        %610 = vmatprep.subr.bf16.mxu0 0
        %611 = vmatpush1.bf16.msra.mxu0 0
        %612 = vmatprep.subr.bf16.mxu0 0
        %613 = vmatpush1.bf16.msra.mxu0 0
        %614 = vmatprep.subr.bf16.mxu0 0
        %615 = vmatpush1.bf16.msra.mxu0 0
        %616 = vmatprep.subr.bf16.mxu0 0
        %617 = vmatpush1.bf16.msra.mxu0 0
        %618 = vmatprep.subr.bf16.mxu0 0
        %619 = vmatpush1.bf16.msra.mxu0 0
        %620 = vmatprep.subr.bf16.mxu0 0
        %621 = vmatpush1.bf16.msra.mxu0 0
        %622 = vmatprep.subr.bf16.mxu0 0
        %623 = vmatpush1.bf16.msra.mxu0 0
        %624 = vmatprep.subr.bf16.mxu0 0
        %625 = vmatpush1.bf16.msra.mxu0 0
        %626 = vmatprep.subr.bf16.mxu0 0
        %627 = vmatpush1.bf16.msra.mxu0 0
        %628 = vmatprep.subr.bf16.mxu0 0
        %629 = vmatpush1.bf16.msra.mxu0 0
        %630 = vmatprep.subr.bf16.mxu0 0
        %631 = vmatpush1.bf16.msra.mxu0 0
        %632 = vmatprep.mubr.bf16.mxu0 0
        %633 = vmatmul.mubr.bf16.gmra.mrb[0].mxu0 %v598
        %v634 = vpop.f32.mrb[0].mxu0
        %v635 = vadd.f32 %v595, %v634
        %v636 = vpop.f32.mrb[0].mxu0
        %v637 = vadd.f32 %v595, %v636
        %v638 = vpop.f32.mrb[0].mxu0
        %v639 = vpop.f32.mrb[0].mxu0
        %640 = vdwg.mxu0
        %641 = vst [vmem:[%s264] sm:$0xff] %v635
        %642 = vst [vmem:[%s264 + $0x8] sm:$0xff] %v637
        %s643 = smul.u32 2, %s16
        %p644 = scmp.lt.s32.totalorder %s643, 3
        %s645 = scalar_select %p644, %s643, 3
        %s646 = smul.addr %s645, 8
        %s647 = scalar_lea.vmem %s5, %s646
        // Predicated region
        $region79: #{trueg_forward.1} parent=73 // pred_check
          %p648 = pneg %p144
        $region80: #{trueg_forward.1} parent=73 // pred_check_branch
          %650 = sbr.rel (%p648) target = $region82
        $region81: #{trueg_forward.1} parent=73 // pred_region
          %s651 = smul.u32 2, %s16
        $region82: #{trueg_forward.1} parent=73 // pred_fallthru
          _
      $region74: #{trueg_forward.1} parent=5 // pred_fallthru
        _
      %p652 = scmp.le.s32.totalorder 2, %s11
      // Predicated region
      $region83: #{trueg_forward.1} parent=5 // pred_check
        %p653 = pneg %p652
      $region84: #{trueg_forward.1} parent=5 // pred_check_branch
        %655 = sbr.rel (%p653) target = $region86
      $region85: #{trueg_forward.1} parent=5 // pred_region
        %s656 = ssub.s32 %s11, 2
        // Predicated region
        $region87: #{trueg_forward.1} parent=85 // pred_check
          %p657 = pneg %p150
        $region88: #{trueg_forward.1} parent=85 // pred_check_branch
          %659 = sbr.rel (%p657) target = $region90
        $region89: #{trueg_forward.1} parent=85 // pred_region
          %s660 = smul.u32 2, %s17
          %p661 = scmp.lt.s32.totalorder %s660, 3
          %s662 = scalar_select %p661, %s660, 3
          %s663 = smul.addr %s662, 8
          %s664 = scalar_lea.vmem %s5, %s663
        $region90: #{trueg_forward.1} parent=85 // pred_fallthru
          _
      $region86: #{trueg_forward.1} parent=5 // pred_fallthru
        _
    $region6: #{trueg_forward.1} parent=1 // loop_footer
      %s15 = sadd.s32 1, %s11
    $region7: #{trueg_forward.1} parent=1 // loop_footer_branch
      %10 = sbr.rel target = $region3
    $region8: #{trueg_forward.1} parent=1 // loop_exit
      _

</llo_original>
